<compile_context>
chip_gen: v7x
topology: tpu7x:2x2x1
jax: 0.10.0
libtpu: 0.0.40
codegen_flags: <defaults>
</compile_context>

<pallas_src>
import math
import jax
import jax.numpy as jnp
from jax import lax
from jax.experimental import pallas as pl
from jax.experimental.pallas import tpu as pltpu


def _round_up(a: int, b: int) -> int:
    return (a + b - 1) // b * b


def _lowrank_kernel(scaling, x_ref, base_ref, alpha_ref, beta_ref, bias_ref,
                    o_ref, acc_ref, t_ref):
    k = pl.program_id(2)
    nk = pl.num_programs(2)

    @pl.when(k == 0)
    def _init():
        acc_ref[...] = jnp.zeros_like(acc_ref)
        t_ref[...] = jnp.zeros_like(t_ref)

    x = x_ref[...]                                            # (tm, tk)

    # Base path: x (tm, tk) . base (tn, tk), contract dim 1 of both -> (tm, tn)
    acc_ref[...] += lax.dot_general(
        x, base_ref[...],
        dimension_numbers=(((1,), (1,)), ((), ())),
        preferred_element_type=jnp.float32)

    # LoRA first stage: x (tm, tk) . beta (r, tk) -> (tm, r)
    t_ref[...] += lax.dot_general(
        x, beta_ref[...],
        dimension_numbers=(((1,), (1,)), ((), ())),
        preferred_element_type=jnp.float32)

    @pl.when(k == nk - 1)
    def _epilogue():
        # Scale the tiny (tm, r) intermediate, then second stage:
        # (tm, r) . alpha (tn, r) -> (tm, tn)
        lora = lax.dot_general(
            t_ref[...] * scaling, alpha_ref[...],
            dimension_numbers=(((1,), (1,)), ((), ())),
            preferred_element_type=jnp.float32)
        o_ref[...] = (acc_ref[...] + lora + bias_ref[...]).astype(o_ref.dtype)


def lowrank_linear(x, base, alpha, beta, bias, scaling=0.5,
                   tm=256, tn=512, tk=512):
    """x: (B, in), base: (out, in), alpha: (out, r), beta: (r, in), bias: (out,)."""
    B, K = x.shape
    N = base.shape[0]
    r = alpha.shape[1]

    # Clamp tiles to the (padded) problem size; keep lane-dense 128-multiples on N/K.
    tm = min(tm, _round_up(B, 8))
    tn = min(tn, _round_up(N, 128))
    tk = min(tk, _round_up(K, 128))

    Mp = _round_up(B, tm)
    Np = _round_up(N, tn)
    Kp = _round_up(K, tk)

    f32 = jnp.float32
    xp = jnp.zeros((Mp, Kp), f32).at[:B, :K].set(x.astype(f32))
    basep = jnp.zeros((Np, Kp), f32).at[:N, :K].set(base.astype(f32))
    alphap = jnp.zeros((Np, r), f32).at[:N, :].set(alpha.astype(f32))
    betap = jnp.zeros((r, Kp), f32).at[:, :K].set(beta.astype(f32))
    biasp = jnp.zeros((1, Np), f32).at[0, :N].set(bias.astype(f32))

    grid = (Mp // tm, Np // tn, Kp // tk)

    kernel = lambda *refs: _lowrank_kernel(float(scaling), *refs)

    cost = pl.CostEstimate(
        flops=2 * B * N * K + 2 * B * r * K + 2 * B * r * N,
        transcendentals=0,
        bytes_accessed=4 * (B * K + N * K + N * r + r * K + N + B * N),
    )

    out_padded = pl.pallas_call(
        kernel,
        out_shape=jax.ShapeDtypeStruct((Mp, Np), f32),
        grid=grid,
        in_specs=[
            pl.BlockSpec((tm, tk), lambda i, j, k: (i, k)),   # x
            pl.BlockSpec((tn, tk), lambda i, j, k: (j, k)),   # base (out, in)
            pl.BlockSpec((tn, r), lambda i, j, k: (j, 0)),    # alpha (resident over K)
            pl.BlockSpec((r, tk), lambda i, j, k: (0, k)),    # beta
            pl.BlockSpec((1, tn), lambda i, j, k: (0, j)),    # bias (resident over K)
        ],
        out_specs=pl.BlockSpec((tm, tn), lambda i, j, k: (i, j)),
        scratch_shapes=[
            pltpu.VMEM((tm, tn), jnp.float32),   # base-path accumulator
            pltpu.VMEM((tm, r), jnp.float32),    # low-rank (tm, r) accumulator
        ],
        compiler_params=pltpu.CompilerParams(
            dimension_semantics=("parallel", "parallel", "arbitrary")),
        cost_estimate=cost,
    )(xp, basep, alphap, betap, biasp)

    return out_padded[:B, :N]


def generate_rank(x, y):
    return min(min(x, y), 8)


if __name__ == "__main__":
    # Small shapes consistent with nn.Linear-style forward; tiles chosen small so
    # the (M, N, K) grid has multiple steps and exercises the accumulator phases.
    batch, in_shape, out_shape = 16, 256, 256
    rank = generate_rank(in_shape, out_shape)   # = 8
    scaling = 0.5

    key = jax.random.PRNGKey(0)
    k_x, k_base, k_alpha, k_bias = jax.random.split(key, 4)

    x = jax.random.normal(k_x, (batch, in_shape), dtype=jnp.float32)
    base = jax.random.normal(k_base, (out_shape, in_shape), dtype=jnp.float32)

    # kaiming_uniform_(a=sqrt(5)) on (out, rank): bound = sqrt(6 / ((1+a^2) * fan_in)),
    # fan_in = rank
    bound = math.sqrt(6.0 / ((1.0 + 5.0) * rank))
    alpha = jax.random.uniform(k_alpha, (out_shape, rank), dtype=jnp.float32,
                               minval=-bound, maxval=bound)
    # torch.nn.init.zeros_ on beta in the module; use random here so the LoRA path
    # is actually exercised by the numerical check.
    beta = jax.random.normal(jax.random.PRNGKey(1), (rank, in_shape),
                             dtype=jnp.float32) * 0.1
    bias = jax.random.normal(k_bias, (out_shape,), dtype=jnp.float32)

    out = lowrank_linear(x, base, alpha, beta, bias, scaling,
                         tm=8, tn=128, tk=128)   # grid (2, 2, 2)
    out = jax.block_until_ready(out)

    # Pure-JAX reference check.
    ref = x @ base.T + scaling * (x @ (alpha @ beta).T) + bias
    assert out.shape == (batch, out_shape)
    assert jnp.allclose(out, ref, atol=1e-3, rtol=1e-3), "mismatch vs reference"

    print("KERNEL_OK")
</pallas_src>

<mosaic_0001>
module attributes {stable_mosaic.version = 11 : i64} {
  func.func @_lambda_(%arg0: i32, %arg1: i32, %arg2: i32, %arg3: memref<8x128xf32, #tpu.memory_space<vmem>>, %arg4: memref<128x128xf32, #tpu.memory_space<vmem>>, %arg5: memref<128x8xf32, #tpu.memory_space<vmem>>, %arg6: memref<8x128xf32, #tpu.memory_space<vmem>>, %arg7: memref<1x128xf32, #tpu.memory_space<vmem>>, %arg8: memref<8x128xf32, #tpu.memory_space<vmem>>, %arg9: memref<8x128xf32, #tpu.memory_space<vmem>>, %arg10: memref<8x8xf32, #tpu.memory_space<vmem>>) attributes {dimension_semantics = [#tpu.dimension_semantics<parallel>, #tpu.dimension_semantics<parallel>, #tpu.dimension_semantics<arbitrary>], iteration_bounds = array<i64: 2, 2, 2>, scalar_prefetch = 0 : i64, scratch_operands = 2 : i64, tpu.core_type = #tpu.core_type<tc>, window_params = [{transform_indices = @transform_0, window_bounds = array<i64: 8, 128>}, {transform_indices = @transform_1, window_bounds = array<i64: 128, 128>}, {transform_indices = @transform_2, window_bounds = array<i64: 128, 8>}, {transform_indices = @transform_3, window_bounds = array<i64: 8, 128>}, {transform_indices = @transform_4, window_bounds = array<i64: 1, 128>}, {transform_indices = @transform_5, window_bounds = array<i64: 8, 128>}]} {
    %c0_i32 = arith.constant 0 : i32
    %0 = arith.cmpi eq, %arg2, %c0_i32 : i32
    %1 = arith.extui %0 : i1 to i32
    %c0_i32_0 = arith.constant 0 : i32
    %2 = arith.cmpi ne, %1, %c0_i32_0 : i32
    scf.if %2 {
      %cst_16 = arith.constant 0.000000e+00 : f32
      %17 = vector.broadcast %cst_16 : f32 to vector<8x128xf32>
      %c0_17 = arith.constant 0 : index
      %c0_18 = arith.constant 0 : index
      %18 = vector.load %arg9[%c0_17, %c0_18] : memref<8x128xf32, #tpu.memory_space<vmem>>, vector<8x128xf32>
      tpu.vector_store %arg9[%c0_17, %c0_18], %17 {strides = array<i32>} : memref<8x128xf32, #tpu.memory_space<vmem>>, vector<8x128xf32>,
      %cst_19 = arith.constant 0.000000e+00 : f32
      %19 = vector.broadcast %cst_19 : f32 to vector<8x8xf32>
      %c0_20 = arith.constant 0 : index
      %c0_21 = arith.constant 0 : index
      %20 = vector.load %arg10[%c0_20, %c0_21] : memref<8x8xf32, #tpu.memory_space<vmem>>, vector<8x8xf32>
      tpu.vector_store %arg10[%c0_20, %c0_21], %19 {strides = array<i32>} : memref<8x8xf32, #tpu.memory_space<vmem>>, vector<8x8xf32>,
    } else {
    }
    %c0 = arith.constant 0 : index
    %c0_1 = arith.constant 0 : index
    %3 = vector.load %arg3[%c0, %c0_1] : memref<8x128xf32, #tpu.memory_space<vmem>>, vector<8x128xf32>
    %c0_2 = arith.constant 0 : index
    %c0_3 = arith.constant 0 : index
    %4 = vector.load %arg9[%c0_2, %c0_3] : memref<8x128xf32, #tpu.memory_space<vmem>>, vector<8x128xf32>
    %c0_4 = arith.constant 0 : index
    %c0_5 = arith.constant 0 : index
    %5 = vector.load %arg4[%c0_4, %c0_5] : memref<128x128xf32, #tpu.memory_space<vmem>>, vector<128x128xf32>
    %cst = arith.constant dense<0.000000e+00> : vector<8x128xf32>
    %6 = tpu.matmul %3, %5, %cst {dimension_numbers = #tpu.dot_dimension_numbers<[1], [1], [0], [0], [0, 0, 1, 0], [], []>} : vector<8x128xf32>, vector<128x128xf32>, vector<8x128xf32> -> vector<8x128xf32>
    %7 = arith.addf %4, %6 : vector<8x128xf32>
    %c0_6 = arith.constant 0 : index
    %c0_7 = arith.constant 0 : index
    %8 = vector.load %arg9[%c0_6, %c0_7] : memref<8x128xf32, #tpu.memory_space<vmem>>, vector<8x128xf32>
    tpu.vector_store %arg9[%c0_6, %c0_7], %7 {strides = array<i32>} : memref<8x128xf32, #tpu.memory_space<vmem>>, vector<8x128xf32>,
    %c0_8 = arith.constant 0 : index
    %c0_9 = arith.constant 0 : index
    %9 = vector.load %arg10[%c0_8, %c0_9] : memref<8x8xf32, #tpu.memory_space<vmem>>, vector<8x8xf32>
    %c0_10 = arith.constant 0 : index
    %c0_11 = arith.constant 0 : index
    %10 = vector.load %arg6[%c0_10, %c0_11] : memref<8x128xf32, #tpu.memory_space<vmem>>, vector<8x128xf32>
    %cst_12 = arith.constant dense<0.000000e+00> : vector<8x8xf32>
    %11 = tpu.matmul %3, %10, %cst_12 {dimension_numbers = #tpu.dot_dimension_numbers<[1], [1], [0], [0], [0, 0, 1, 0], [], []>} : vector<8x128xf32>, vector<8x128xf32>, vector<8x8xf32> -> vector<8x8xf32>
    %12 = arith.addf %9, %11 : vector<8x8xf32>
    %c0_13 = arith.constant 0 : index
    %c0_14 = arith.constant 0 : index
    %13 = vector.load %arg10[%c0_13, %c0_14] : memref<8x8xf32, #tpu.memory_space<vmem>>, vector<8x8xf32>
    tpu.vector_store %arg10[%c0_13, %c0_14], %12 {strides = array<i32>} : memref<8x8xf32, #tpu.memory_space<vmem>>, vector<8x8xf32>,
    %c1_i32 = arith.constant 1 : i32
    %14 = arith.cmpi eq, %arg2, %c1_i32 : i32
    %15 = arith.extui %14 : i1 to i32
    %c0_i32_15 = arith.constant 0 : i32
    %16 = arith.cmpi ne, %15, %c0_i32_15 : i32
    scf.if %16 {
      %c0_16 = arith.constant 0 : index
      %c0_17 = arith.constant 0 : index
      %17 = vector.load %arg10[%c0_16, %c0_17] : memref<8x8xf32, #tpu.memory_space<vmem>>, vector<8x8xf32>
      %cst_18 = arith.constant 5.000000e-01 : f32
      %18 = vector.broadcast %cst_18 : f32 to vector<8x8xf32>
      %19 = arith.mulf %17, %18 : vector<8x8xf32>
      %c0_19 = arith.constant 0 : index
      %c0_20 = arith.constant 0 : index
      %20 = vector.load %arg5[%c0_19, %c0_20] : memref<128x8xf32, #tpu.memory_space<vmem>>, vector<128x8xf32>
      %cst_21 = arith.constant dense<0.000000e+00> : vector<8x128xf32>
      %21 = tpu.matmul %19, %20, %cst_21 {dimension_numbers = #tpu.dot_dimension_numbers<[1], [1], [0], [0], [0, 0, 1, 0], [], []>} : vector<8x8xf32>, vector<128x8xf32>, vector<8x128xf32> -> vector<8x128xf32>
      %c0_22 = arith.constant 0 : index
      %c0_23 = arith.constant 0 : index
      %22 = vector.load %arg9[%c0_22, %c0_23] : memref<8x128xf32, #tpu.memory_space<vmem>>, vector<8x128xf32>
      %23 = arith.addf %22, %21 : vector<8x128xf32>
      %c0_24 = arith.constant 0 : index
      %c0_25 = arith.constant 0 : index
      %24 = vector.load %arg7[%c0_24, %c0_25] : memref<1x128xf32, #tpu.memory_space<vmem>>, vector<1x128xf32>
      %25 = vector.broadcast %24 : vector<1x128xf32> to vector<8x128xf32>
      %26 = arith.addf %23, %25 : vector<8x128xf32>
      %c0_26 = arith.constant 0 : index
      %c0_27 = arith.constant 0 : index
      %27 = vector.load %arg8[%c0_26, %c0_27] : memref<8x128xf32, #tpu.memory_space<vmem>>, vector<8x128xf32>
      tpu.vector_store %arg8[%c0_26, %c0_27], %26 {strides = array<i32>} : memref<8x128xf32, #tpu.memory_space<vmem>>, vector<8x128xf32>,
    } else {
    }
    return
  }
  func.func @transform_0(%arg0: i32, %arg1: i32, %arg2: i32) -> (i32, i32) {
    %c0_i32 = arith.constant 0 : i32
    return %arg0, %arg2 : i32, i32
  }
  func.func @transform_1(%arg0: i32, %arg1: i32, %arg2: i32) -> (i32, i32) {
    %c0_i32 = arith.constant 0 : i32
    return %arg1, %arg2 : i32, i32
  }
  func.func @transform_2(%arg0: i32, %arg1: i32, %arg2: i32) -> (i32, i32) {
    %c0_i32 = arith.constant 0 : i32
    %c0_i32_0 = arith.constant 0 : i32
    return %arg1, %c0_i32 : i32, i32
  }
  func.func @transform_3(%arg0: i32, %arg1: i32, %arg2: i32) -> (i32, i32) {
    %c0_i32 = arith.constant 0 : i32
    %c0_i32_0 = arith.constant 0 : i32
    return %c0_i32, %arg2 : i32, i32
  }
  func.func @transform_4(%arg0: i32, %arg1: i32, %arg2: i32) -> (i32, i32) {
    %c0_i32 = arith.constant 0 : i32
    %c0_i32_0 = arith.constant 0 : i32
    return %c0_i32, %arg1 : i32, i32
  }
  func.func @transform_5(%arg0: i32, %arg1: i32, %arg2: i32) -> (i32, i32) {
    %c0_i32 = arith.constant 0 : i32
    return %arg0, %arg1 : i32, i32
  }
}

</mosaic_0001>

<llo_original>
// kernel: tpu_custom_call.1
$region0: #{tpu_custom_call.1}
  #allocation0 [shape = 'u32[]', space=smem, size = 0x4, offset = 0x4, fixed_abs, tag = 'smem constant byte address 0x4 - core index']
  #allocation1 [shape = 'u32[144,128]{1,0:T(1,128)}', space=vmem, size = 0x12000, scoped, tag = 'internal scratch']
  #allocation2 [shape = 'f32[8,128]{1,0:T(8,128)}', space=vmem, size = 0x1000, scoped, tag = 'scratch operand']
  #allocation3 [shape = 'f32[8,8]{1,0:T(8,128)}', space=vmem, size = 0x1000, scoped, tag = 'scratch operand']
  %s0 = inlined_call_operand.vmem [shape: f32[16,256], index: 0, kind: input, shape index: {}]
  %s1 = inlined_call_operand.hbm [shape: f32[256,256], index: 1, kind: input, shape index: {}]
  %s2 = inlined_call_operand.vmem [shape: f32[256,8], index: 2, kind: input, shape index: {}]
  %s3 = inlined_call_operand.vmem [shape: f32[8,256], index: 3, kind: input, shape index: {}]
  %s4 = inlined_call_operand.vmem [shape: f32[1,256], index: 4, kind: input, shape index: {}]
  %s5 = inlined_call_operand.hbm [shape: f32[16,256], index: 5, kind: output, shape index: {}]
  %s6 = sld [smem:[#allocation0]]
  $region65: #{tpu_custom_call.1} parent=0
    _
  %s8 = ssub.s32 1, %s6
  %s9 = scalar_select 0, %s8, %s6
  $region1: #{tpu_custom_call.1} parent=0
    #allocation4 [shape = 'u8[131072]{0}', space=vmem, size = 0x20000, scoped, tag = 'input window, operand 1']
    #allocation5 [shape = 's32[2]{0}', space=sflag, size = 0x8, scoped, tag = 'scoped memory for tpu_custom_call.1']
    #allocation6 [shape = 's32[2]{0}', space=sflag, size = 0x8, scoped, tag = 'scoped memory for tpu_custom_call.1']
    #allocation7 [shape = 'u8[8192]{0}', space=vmem, size = 0x2000, scoped, tag = 'output window, operand 0']
    %10 = vsyncpa [#allocation5], 0
    %s11 = scalar_lea.sflag [#allocation5], 1
    %12 = vsyncpa %s11, 0
    %13 = vsyncpa [#allocation6], 0
    %s14 = scalar_lea.sflag [#allocation6], 1
    %15 = vsyncpa %s14, 0
    loop: start=0, step=1, limit=10
    $region2: #{tpu_custom_call.1} parent=1 // loop_pre_header
      _
    $region3: #{tpu_custom_call.1} parent=1 // loop_header
      %s17 = sphi 0, %s21
      %p18 = scmp.ge.s32.totalorder %s17, 10
      %s24 = sphi 0, %s43
      %s25 = sphi 0, %s39
      %s26 = sphi 0, %s35
      %s27 = sphi 0, %s24
      %s28 = sphi 0, %s25
      %s29 = sphi 0, %s26
      %s30 = sphi 0, %s27
      %s31 = sphi 0, %s28
      %s32 = sphi 0, %s29
      %s48 = sphi 0, %s50
      %s51 = sphi 0, %s48
      %s52 = sphi 0, %s51
      %s68 = sphi 0, %s52
      %s76 = sphi 0, %s78
      %s79 = sphi 0, %s76
      %s80 = sphi 0, %s79
      %s96 = sphi 0, %s80
      %s102 = sphi 0, %s104
      %s105 = sphi 0, %s102
      %s106 = sphi 0, %s105
      %s122 = sphi 0, %s106
      %s128 = sphi 0, %s130
      %s131 = sphi 0, %s128
      %s132 = sphi 0, %s131
      %s148 = sphi 0, %s132
      %s154 = sphi 0, %s156
      %s157 = sphi 0, %s154
      %s158 = sphi 0, %s157
      %s174 = sphi 0, %s158
      %s182 = sphi 0, %s184
      %s185 = sphi 0, %s182
      %s186 = sphi 0, %s185
      %s202 = sphi 0, %s186
    $region4: #{tpu_custom_call.1} parent=1 // loop_header_branch
      %20 = sbr.rel (%p18) target = $region8
    $region5: #{tpu_custom_call.1} parent=1 // loop_body
      %s22 = ssub.s32 %s17, 1
      %s23 = ssub.s32 %s17, 2
      %s33 = sadd.s32 1, %s26
      %p34 = scmp.ge.s32.totalorder %s33, 2
      %s35 = scalar_select %p34, 0, %s33
      %s36 = sadd.s32 1, %s25
      %s37 = scalar_select %p34, %s36, %s25
      %p38 = scmp.ge.s32.totalorder %s37, 2
      %s39 = scalar_select %p38, 0, %s37
      %s40 = sadd.s32 1, %s24
      %s41 = scalar_select %p38, %s40, %s24
      %p42 = scmp.ge.s32.totalorder %s41, 2
      %s43 = scalar_select %p42, 0, %s41
      %s44 = ssub.s32 %s24, %s43
      %s45 = ssub.s32 %s26, %s35
      %s46 = sor.u32 %s44, %s45
      %p47 = scmp.eq.s32.totalorder %s46, 0
      %s49 = sadd.s32 %s48, 1
      %s50 = scalar_select %p47, %s48, %s49
      %p53 = pneg %p47
      %p54 = scmp.eq.s32.totalorder %s17, 7
      %p55 = por %p53, %p54
      %p56 = scmp.ne.s32.totalorder %s48, %s51
      %p57 = scmp.eq.s32.totalorder %s17, 0
      %p58 = por %p56, %p57
      %p59 = scmp.ne.s32.totalorder %s48, %s51
      %p60 = scmp.eq.s32.totalorder %s22, 7
      %p61 = por %p59, %p60
      %p62 = scmp.ne.s32.totalorder %s51, %s52
      %p63 = scmp.eq.s32.totalorder %s22, 0
      %p64 = por %p62, %p63
      %p65 = scmp.ne.s32.totalorder %s51, %s52
      %p66 = scmp.eq.s32.totalorder %s23, 7
      %p67 = por %p65, %p66
      %p69 = scmp.ne.s32.totalorder %s52, %s68
      %p70 = scmp.eq.s32.totalorder %s23, 0
      %p71 = por %p69, %p70
      %s72 = ssub.s32 %s25, %s39
      %s73 = ssub.s32 %s26, %s35
      %s74 = sor.u32 %s72, %s73
      %p75 = scmp.eq.s32.totalorder %s74, 0
      %s77 = sadd.s32 %s76, 1
      %s78 = scalar_select %p75, %s76, %s77
      %p81 = pneg %p75
      %p82 = scmp.eq.s32.totalorder %s17, 7
      %p83 = por %p81, %p82
      %p84 = scmp.ne.s32.totalorder %s76, %s79
      %p85 = scmp.eq.s32.totalorder %s17, 0
      %p86 = por %p84, %p85
      %p87 = scmp.ne.s32.totalorder %s76, %s79
      %p88 = scmp.eq.s32.totalorder %s22, 7
      %p89 = por %p87, %p88
      %p90 = scmp.ne.s32.totalorder %s79, %s80
      %p91 = scmp.eq.s32.totalorder %s22, 0
      %p92 = por %p90, %p91
      %p93 = scmp.ne.s32.totalorder %s79, %s80
      %p94 = scmp.eq.s32.totalorder %s23, 7
      %p95 = por %p93, %p94
      %p97 = scmp.ne.s32.totalorder %s80, %s96
      %p98 = scmp.eq.s32.totalorder %s23, 0
      %p99 = por %p97, %p98
      %s100 = ssub.s32 %s25, %s39
      %p101 = scmp.eq.s32.totalorder %s100, 0
      %s103 = sadd.s32 %s102, 1
      %s104 = scalar_select %p101, %s102, %s103
      %p107 = pneg %p101
      %p108 = scmp.eq.s32.totalorder %s17, 7
      %p109 = por %p107, %p108
      %p110 = scmp.ne.s32.totalorder %s102, %s105
      %p111 = scmp.eq.s32.totalorder %s17, 0
      %p112 = por %p110, %p111
      %p113 = scmp.ne.s32.totalorder %s102, %s105
      %p114 = scmp.eq.s32.totalorder %s22, 7
      %p115 = por %p113, %p114
      %p116 = scmp.ne.s32.totalorder %s105, %s106
      %p117 = scmp.eq.s32.totalorder %s22, 0
      %p118 = por %p116, %p117
      %p119 = scmp.ne.s32.totalorder %s105, %s106
      %p120 = scmp.eq.s32.totalorder %s23, 7
      %p121 = por %p119, %p120
      %p123 = scmp.ne.s32.totalorder %s106, %s122
      %p124 = scmp.eq.s32.totalorder %s23, 0
      %p125 = por %p123, %p124
      %s126 = ssub.s32 %s26, %s35
      %p127 = scmp.eq.s32.totalorder %s126, 0
      %s129 = sadd.s32 %s128, 1
      %s130 = scalar_select %p127, %s128, %s129
      %p133 = pneg %p127
      %p134 = scmp.eq.s32.totalorder %s17, 7
      %p135 = por %p133, %p134
      %p136 = scmp.ne.s32.totalorder %s128, %s131
      %p137 = scmp.eq.s32.totalorder %s17, 0
      %p138 = por %p136, %p137
      %p139 = scmp.ne.s32.totalorder %s128, %s131
      %p140 = scmp.eq.s32.totalorder %s22, 7
      %p141 = por %p139, %p140
      %p142 = scmp.ne.s32.totalorder %s131, %s132
      %p143 = scmp.eq.s32.totalorder %s22, 0
      %p144 = por %p142, %p143
      %p145 = scmp.ne.s32.totalorder %s131, %s132
      %p146 = scmp.eq.s32.totalorder %s23, 7
      %p147 = por %p145, %p146
      %p149 = scmp.ne.s32.totalorder %s132, %s148
      %p150 = scmp.eq.s32.totalorder %s23, 0
      %p151 = por %p149, %p150
      %s152 = ssub.s32 %s25, %s39
      %p153 = scmp.eq.s32.totalorder %s152, 0
      %s155 = sadd.s32 %s154, 1
      %s156 = scalar_select %p153, %s154, %s155
      %p159 = pneg %p153
      %p160 = scmp.eq.s32.totalorder %s17, 7
      %p161 = por %p159, %p160
      %p162 = scmp.ne.s32.totalorder %s154, %s157
      %p163 = scmp.eq.s32.totalorder %s17, 0
      %p164 = por %p162, %p163
      %p165 = scmp.ne.s32.totalorder %s154, %s157
      %p166 = scmp.eq.s32.totalorder %s22, 7
      %p167 = por %p165, %p166
      %p168 = scmp.ne.s32.totalorder %s157, %s158
      %p169 = scmp.eq.s32.totalorder %s22, 0
      %p170 = por %p168, %p169
      %p171 = scmp.ne.s32.totalorder %s157, %s158
      %p172 = scmp.eq.s32.totalorder %s23, 7
      %p173 = por %p171, %p172
      %p175 = scmp.ne.s32.totalorder %s158, %s174
      %p176 = scmp.eq.s32.totalorder %s23, 0
      %p177 = por %p175, %p176
      %s178 = ssub.s32 %s24, %s43
      %s179 = ssub.s32 %s25, %s39
      %s180 = sor.u32 %s178, %s179
      %p181 = scmp.eq.s32.totalorder %s180, 0
      %s183 = sadd.s32 %s182, 1
      %s184 = scalar_select %p181, %s182, %s183
      %p187 = pneg %p181
      %p188 = scmp.eq.s32.totalorder %s17, 7
      %p189 = por %p187, %p188
      %p190 = scmp.ne.s32.totalorder %s182, %s185
      %p191 = scmp.eq.s32.totalorder %s17, 0
      %p192 = por %p190, %p191
      %p193 = scmp.ne.s32.totalorder %s182, %s185
      %p194 = scmp.eq.s32.totalorder %s22, 7
      %p195 = por %p193, %p194
      %p196 = scmp.ne.s32.totalorder %s185, %s186
      %p197 = scmp.eq.s32.totalorder %s22, 0
      %p198 = por %p196, %p197
      %p199 = scmp.ne.s32.totalorder %s185, %s186
      %p200 = scmp.eq.s32.totalorder %s23, 7
      %p201 = por %p199, %p200
      %p203 = scmp.ne.s32.totalorder %s186, %s202
      %p204 = scmp.eq.s32.totalorder %s23, 0
      %p205 = por %p203, %p204
      %p206 = scmp.le.s32.totalorder 1, %s17
      %p207 = scmp.lt.s32.totalorder %s17, 9
      %p208 = pnand %p206, %p207
      %p209 = pneg %p208
      // Predicated region
      $region9: #{tpu_custom_call.1} parent=5 // pred_check
        _
      $region10: #{tpu_custom_call.1} parent=5 // pred_check_branch
        %211 = sbr.rel (%p208) target = $region12
      $region11: #{tpu_custom_call.1} parent=5 // pred_region
        %s212 = ssub.s32 %s17, 1
      $region12: #{tpu_custom_call.1} parent=5 // pred_fallthru
        _
      %p213 = scmp.lt.s32.totalorder %s17, 8
      // Predicated region
      $region13: #{tpu_custom_call.1} parent=5 // pred_check
        %p214 = pneg %p213
      $region14: #{tpu_custom_call.1} parent=5 // pred_check_branch
        %216 = sbr.rel (%p214) target = $region16
      $region15: #{tpu_custom_call.1} parent=5 // pred_region
        // Predicated region
        $region17: #{tpu_custom_call.1} parent=15 // pred_check
          %p217 = pneg %p58
        $region18: #{tpu_custom_call.1} parent=15 // pred_check_branch
          %219 = sbr.rel (%p217) target = $region20
        $region19: #{tpu_custom_call.1} parent=15 // pred_region
          %p220 = scmp.lt.s32.totalorder %s24, 1
          %s221 = scalar_select %p220, %s24, 1
          %p222 = scmp.lt.s32.totalorder %s26, 1
          %s223 = scalar_select %p222, %s26, 1
          %s224 = smul.addr %s221, 2
          %s225 = sadd.s32 %s223, %s224
          %s226 = smul.addr %s225, 8
          %s227 = scalar_lea.vmem %s0, %s226
        $region20: #{tpu_custom_call.1} parent=15 // pred_fallthru
          _
        // Predicated region
        $region21: #{tpu_custom_call.1} parent=15 // pred_check
          %p228 = pneg %p86
        $region22: #{tpu_custom_call.1} parent=15 // pred_check_branch
          %230 = sbr.rel (%p228) target = $region24
        $region23: #{tpu_custom_call.1} parent=15 // pred_region
          %s231 = sand.u32 %s76, 1
          %s232 = scalar_lea.sflag [#allocation5], %s231
          %s233 = sand.u32 %s76, 1
          %s234 = smul.addr %s233, 128
          %s235 = scalar_lea.vmem [#allocation4], %s234
          %s236 = smul.u32 16, %s25
          %s238 = ssub.s32 2048, 2048
          %239 = vsyncadd %s232, %s238
          %s240 = smul.addr %s236, 2
          %s241 = sadd.s32 %s26, %s240
          %s242 = smul.addr %s241, 128
          %s243 = scalar_lea.hbm %s1, %s242
          %s244 = sshll.u32 %s235, 4
          %s245 = int_to_ptr.vmem [resolvable:$true] %s244
          %250 = dma.hbm_to_vmem [thread:$0]  %s243, 2048, %s245, %s232, 256, 128, 8
        $region24: #{tpu_custom_call.1} parent=15 // pred_fallthru
          _
        // Predicated region
        $region25: #{tpu_custom_call.1} parent=15 // pred_check
          %p251 = pneg %p112
        $region26: #{tpu_custom_call.1} parent=15 // pred_check_branch
          %253 = sbr.rel (%p251) target = $region28
        $region27: #{tpu_custom_call.1} parent=15 // pred_region
          %s254 = smul.u32 16, %s25
          %p255 = scmp.lt.s32.totalorder %s254, 31
          %s256 = scalar_select %p255, %s254, 31
          %s257 = smul.addr %s256, 8
          %s258 = scalar_lea.vmem %s2, %s257
          %s259 = smul.u32 16, %s25
        $region28: #{tpu_custom_call.1} parent=15 // pred_fallthru
          _
        // Predicated region
        $region29: #{tpu_custom_call.1} parent=15 // pred_check
          %p260 = pneg %p138
        $region30: #{tpu_custom_call.1} parent=15 // pred_check_branch
          %262 = sbr.rel (%p260) target = $region32
        $region31: #{tpu_custom_call.1} parent=15 // pred_region
          %p263 = scmp.lt.s32.totalorder %s26, 1
          %s264 = scalar_select %p263, %s26, 1
          %s265 = smul.addr %s264, 8
          %s266 = scalar_lea.vmem %s3, %s265
        $region32: #{tpu_custom_call.1} parent=15 // pred_fallthru
          _
        // Predicated region
        $region33: #{tpu_custom_call.1} parent=15 // pred_check
          %p267 = pneg %p164
        $region34: #{tpu_custom_call.1} parent=15 // pred_check_branch
          %269 = sbr.rel (%p267) target = $region36
        $region35: #{tpu_custom_call.1} parent=15 // pred_region
          %p270 = scmp.lt.s32.totalorder %s25, 1
          %s271 = scalar_select %p270, %s25, 1
          %s272 = scalar_lea.vmem %s4, %s271
        $region36: #{tpu_custom_call.1} parent=15 // pred_fallthru
          _
      $region16: #{tpu_custom_call.1} parent=5 // pred_fallthru
        _
      %p273 = scmp.le.s32.totalorder 1, %s17
      %p274 = scmp.lt.s32.totalorder %s17, 9
      %p275 = pnand %p273, %p274
      %p276 = pneg %p275
      // Predicated region
      $region37: #{tpu_custom_call.1} parent=5 // pred_check
        _
      $region38: #{tpu_custom_call.1} parent=5 // pred_check_branch
        %278 = sbr.rel (%p275) target = $region40
      $region39: #{tpu_custom_call.1} parent=5 // pred_region
        %s279 = ssub.s32 %s17, 1
        %s280 = sand.u32 %s79, 1
        %s281 = scalar_lea.sflag [#allocation5], %s280
        %s282 = sand.u32 %s79, 1
        %s283 = smul.addr %s282, 128
        %s284 = scalar_lea.vmem [#allocation4], %s283
        // Predicated region
        $region41: #{tpu_custom_call.1} parent=39 // pred_check
          %p285 = pneg %p92
        $region42: #{tpu_custom_call.1} parent=39 // pred_check_branch
          %287 = sbr.rel (%p285) target = $region44
        $region43: #{tpu_custom_call.1} parent=39 // pred_region
          %288 = dma.done %s281, 2048
        $region44: #{tpu_custom_call.1} parent=39 // pred_fallthru
          _
        %p289 = scmp.lt.s32.totalorder %s27, 1
        %s290 = scalar_select %p289, %s27, 1
        %p291 = scmp.lt.s32.totalorder %s29, 1
        %s292 = scalar_select %p291, %s29, 1
        %s293 = smul.addr %s290, 2
        %s294 = sadd.s32 %s292, %s293
        %s295 = smul.addr %s294, 8
        %s296 = scalar_lea.vmem %s0, %s295
        %p297 = pneg %p64
        %p298 = pneg %p61
        %s299 = sand.u32 %s79, 1
        %s300 = scalar_lea.sflag [#allocation5], %s299
        %s301 = sand.u32 %s79, 1
        %s302 = smul.addr %s301, 128
        %s303 = scalar_lea.vmem [#allocation4], %s302
        %p304 = pneg %p92
        %p305 = pneg %p89
        %s306 = smul.u32 16, %s28
        %p307 = scmp.lt.s32.totalorder %s306, 31
        %s308 = scalar_select %p307, %s306, 31
        %s309 = smul.addr %s308, 8
        %s310 = scalar_lea.vmem %s2, %s309
        %p311 = pneg %p118
        %p312 = pneg %p115
        %p313 = scmp.lt.s32.totalorder %s29, 1
        %s314 = scalar_select %p313, %s29, 1
        %s315 = smul.addr %s314, 8
        %s316 = scalar_lea.vmem %s3, %s315
        %p317 = pneg %p144
        %p318 = pneg %p141
        %p319 = scmp.lt.s32.totalorder %s28, 1
        %s320 = scalar_select %p319, %s28, 1
        %s321 = scalar_lea.vmem %s4, %s320
        %p322 = pneg %p170
        %p323 = pneg %p167
        %p324 = pneg %p198
        %p325 = pneg %p195
        %s326 = sand.u32 %s185, 1
        %s327 = scalar_lea.sflag [#allocation6], %s326
        %s328 = sand.u32 %s185, 1
        %s329 = smul.addr %s328, 8
        %s330 = scalar_lea.vmem [#allocation7], %s329
        %p331 = scmp.lt.s32.totalorder %s27, 1
        %s332 = scalar_select %p331, %s27, 1
        %p333 = scmp.lt.s32.totalorder %s29, 1
        %s334 = scalar_select %p333, %s29, 1
        %s335 = smul.addr %s332, 2
        %s336 = sadd.s32 %s334, %s335
        %s337 = smul.addr %s336, 8
        %s338 = scalar_lea.vmem %s0, %s337
        %s339 = smul.u32 16, %s28
        %s340 = smul.u32 16, %s28
        %p341 = scmp.lt.s32.totalorder %s340, 31
        %s342 = scalar_select %p341, %s340, 31
        %s343 = smul.addr %s342, 8
        %s344 = scalar_lea.vmem %s2, %s343
        %s345 = smul.u32 16, %s28
        %p346 = scmp.lt.s32.totalorder %s29, 1
        %s347 = scalar_select %p346, %s29, 1
        %s348 = smul.addr %s347, 8
        %s349 = scalar_lea.vmem %s3, %s348
        %p350 = scmp.lt.s32.totalorder %s28, 1
        %s351 = scalar_select %p350, %s28, 1
        %s352 = scalar_lea.vmem %s4, %s351
        %p353 = scmp.eq.s32.totalorder %s29, 0
        // Predicated region
        $region45: #{tpu_custom_call.1} parent=39 // pred_check
          %p354 = pneg %p353
        $region46: #{tpu_custom_call.1} parent=39 // pred_check_branch
          %356 = sbr.rel (%p354) target = $region48
        $region47: #{tpu_custom_call.1} parent=39 // pred_region
          %357 = vst [vmem:[#allocation2] sm:$0xff] 0.0
          %vm358 = vcmask 64512
          %359 = vst.msk [vmem:[#allocation3] sm:$0xff] %vm358, 0.0
        $region48: #{tpu_custom_call.1} parent=39 // pred_fallthru
          _
        %v360 = vld [vmem:[%s338] sm:$0xff]
        %v361 = vld [vmem:[#allocation2] sm:$0xff]
        %v362 = vld [vmem:[%s284] sm:$0xff]
        %v363 = vld [vmem:[%s284 + $0x8] sm:$0xff]
        %v364 = vld [vmem:[%s284 + $0x10] sm:$0xff]
        %v365 = vld [vmem:[%s284 + $0x18] sm:$0xff]
        %v366 = vld [vmem:[%s284 + $0x20] sm:$0xff]
        %v367 = vld [vmem:[%s284 + $0x28] sm:$0xff]
        %v368 = vld [vmem:[%s284 + $0x30] sm:$0xff]
        %v369 = vld [vmem:[%s284 + $0x38] sm:$0xff]
        %v370 = vld [vmem:[%s284 + $0x40] sm:$0xff]
        %v371 = vld [vmem:[%s284 + $0x48] sm:$0xff]
        %v372 = vld [vmem:[%s284 + $0x50] sm:$0xff]
        %v373 = vld [vmem:[%s284 + $0x58] sm:$0xff]
        %v374 = vld [vmem:[%s284 + $0x60] sm:$0xff]
        %v375 = vld [vmem:[%s284 + $0x68] sm:$0xff]
        %v376 = vld [vmem:[%s284 + $0x70] sm:$0xff]
        %v377 = vld [vmem:[%s284 + $0x78] sm:$0xff]
        %378 = vmatprep.subr.mxu0 0.0
        %379 = vmatpush1.xpose.msra.mxu0 %v362
        %380 = vmatprep.subr.mxu0 0.0
        %381 = vmatpush1.xpose.msra.mxu0 %v363
        %382 = vmatprep.subr.mxu0 0.0
        %383 = vmatpush1.xpose.msra.mxu0 %v364
        %384 = vmatprep.subr.mxu0 0.0
        %385 = vmatpush1.xpose.msra.mxu0 %v365
        %386 = vmatprep.subr.mxu0 0.0
        %387 = vmatpush1.xpose.msra.mxu0 %v366
        %388 = vmatprep.subr.mxu0 0.0
        %389 = vmatpush1.xpose.msra.mxu0 %v367
        %390 = vmatprep.subr.mxu0 0.0
        %391 = vmatpush1.xpose.msra.mxu0 %v368
        %392 = vmatprep.subr.mxu0 0.0
        %393 = vmatpush1.xpose.msra.mxu0 %v369
        %394 = vmatprep.subr.mxu0 0.0
        %395 = vmatpush1.xpose.msra.mxu0 %v370
        %396 = vmatprep.subr.mxu0 0.0
        %397 = vmatpush1.xpose.msra.mxu0 %v371
        %398 = vmatprep.subr.mxu0 0.0
        %399 = vmatpush1.xpose.msra.mxu0 %v372
        %400 = vmatprep.subr.mxu0 0.0
        %401 = vmatpush1.xpose.msra.mxu0 %v373
        %402 = vmatprep.subr.mxu0 0.0
        %403 = vmatpush1.xpose.msra.mxu0 %v374
        %404 = vmatprep.subr.mxu0 0.0
        %405 = vmatpush1.xpose.msra.mxu0 %v375
        %406 = vmatprep.subr.mxu0 0.0
        %407 = vmatpush1.xpose.msra.mxu0 %v376
        %408 = vmatprep.subr.mxu0 0.0
        %409 = vmatpush1.xpose.msra.mxu0 %v377
        %410 = vmatprep.subr.mxu0 0.0
        %411 = vmatpush1.xpose.msra.mxu0 0.0
        %412 = vmatprep.subr.mxu0 0.0
        %413 = vmatpush1.xpose.msra.mxu0 0.0
        %414 = vmatprep.subr.mxu0 0.0
        %415 = vmatpush1.xpose.msra.mxu0 0.0
        %416 = vmatprep.subr.mxu0 0.0
        %417 = vmatpush1.xpose.msra.mxu0 0.0
        %418 = vmatprep.subr.mxu0 0.0
        %419 = vmatpush1.xpose.msra.mxu0 0.0
        %420 = vmatprep.subr.mxu0 0.0
        %421 = vmatpush1.xpose.msra.mxu0 0.0
        %422 = vmatprep.subr.mxu0 0.0
        %423 = vmatpush1.xpose.msra.mxu0 0.0
        %424 = vmatprep.subr.mxu0 0.0
        %425 = vmatpush1.xpose.msra.mxu0 0.0
        %426 = vmatprep.subr.mxu0 0.0
        %427 = vmatpush1.xpose.msra.mxu0 0.0
        %428 = vmatprep.subr.mxu0 0.0
        %429 = vmatpush1.xpose.msra.mxu0 0.0
        %430 = vmatprep.subr.mxu0 0.0
        %431 = vmatpush1.xpose.msra.mxu0 0.0
        %432 = vmatprep.subr.mxu0 0.0
        %433 = vmatpush1.xpose.msra.mxu0 0.0
        %434 = vmatprep.subr.mxu0 0.0
        %435 = vmatpush1.xpose.msra.mxu0 0.0
        %436 = vmatprep.subr.mxu0 0.0
        %437 = vmatpush1.xpose.msra.mxu0 0.0
        %438 = vmatprep.subr.mxu0 0.0
        %439 = vmatpush1.xpose.msra.mxu0 0.0
        %440 = vmatprep.subr.mxu0 0.0
        %441 = vmatpush1.xpose.msra.mxu0 0.0
        %442 = vmatprep.mubr.f32.mxu0 0.0
        %443 = vmatmul.mubr.f32.gmra.mrb[0].mxu0 %v360
        %v444 = vpop.f32.mrb[0].mxu0
        %v445 = vadd.f32 0.0, %v444
        %v446 = vpop.f32.mrb[0].mxu0
        %447 = vdwg.mxu0
        %v448 = vadd.f32 %v361, %v445
        %449 = vst [vmem:[#allocation2] sm:$0xff] %v448
        %v450 = vld [vmem:[#allocation3] sm:$0xff]
        %v451 = vld [vmem:[%s349] sm:$0xff]
        %452 = vmatprep.subr.mxu0 0.0
        %453 = vmatpush1.xpose.msra.mxu0 %v451
        %454 = vmatprep.subr.mxu0 0.0
        %455 = vmatpush1.xpose.msra.mxu0 0.0
        %456 = vmatprep.subr.mxu0 0.0
        %457 = vmatpush1.xpose.msra.mxu0 0.0
        %458 = vmatprep.subr.mxu0 0.0
        %459 = vmatpush1.xpose.msra.mxu0 0.0
        %460 = vmatprep.subr.mxu0 0.0
        %461 = vmatpush1.xpose.msra.mxu0 0.0
        %462 = vmatprep.subr.mxu0 0.0
        %463 = vmatpush1.xpose.msra.mxu0 0.0
        %464 = vmatprep.subr.mxu0 0.0
        %465 = vmatpush1.xpose.msra.mxu0 0.0
        %466 = vmatprep.subr.mxu0 0.0
        %467 = vmatpush1.xpose.msra.mxu0 0.0
        %468 = vmatprep.subr.mxu0 0.0
        %469 = vmatpush1.xpose.msra.mxu0 0.0
        %470 = vmatprep.subr.mxu0 0.0
        %471 = vmatpush1.xpose.msra.mxu0 0.0
        %472 = vmatprep.subr.mxu0 0.0
        %473 = vmatpush1.xpose.msra.mxu0 0.0
        %474 = vmatprep.subr.mxu0 0.0
        %475 = vmatpush1.xpose.msra.mxu0 0.0
        %476 = vmatprep.subr.mxu0 0.0
        %477 = vmatpush1.xpose.msra.mxu0 0.0
        %478 = vmatprep.subr.mxu0 0.0
        %479 = vmatpush1.xpose.msra.mxu0 0.0
        %480 = vmatprep.subr.mxu0 0.0
        %481 = vmatpush1.xpose.msra.mxu0 0.0
        %482 = vmatprep.subr.mxu0 0.0
        %483 = vmatpush1.xpose.msra.mxu0 0.0
        %484 = vmatprep.subr.mxu0 0.0
        %485 = vmatpush1.xpose.msra.mxu0 0.0
        %486 = vmatprep.subr.mxu0 0.0
        %487 = vmatpush1.xpose.msra.mxu0 0.0
        %488 = vmatprep.subr.mxu0 0.0
        %489 = vmatpush1.xpose.msra.mxu0 0.0
        %490 = vmatprep.subr.mxu0 0.0
        %491 = vmatpush1.xpose.msra.mxu0 0.0
        %492 = vmatprep.subr.mxu0 0.0
        %493 = vmatpush1.xpose.msra.mxu0 0.0
        %494 = vmatprep.subr.mxu0 0.0
        %495 = vmatpush1.xpose.msra.mxu0 0.0
        %496 = vmatprep.subr.mxu0 0.0
        %497 = vmatpush1.xpose.msra.mxu0 0.0
        %498 = vmatprep.subr.mxu0 0.0
        %499 = vmatpush1.xpose.msra.mxu0 0.0
        %500 = vmatprep.subr.mxu0 0.0
        %501 = vmatpush1.xpose.msra.mxu0 0.0
        %502 = vmatprep.subr.mxu0 0.0
        %503 = vmatpush1.xpose.msra.mxu0 0.0
        %504 = vmatprep.subr.mxu0 0.0
        %505 = vmatpush1.xpose.msra.mxu0 0.0
        %506 = vmatprep.subr.mxu0 0.0
        %507 = vmatpush1.xpose.msra.mxu0 0.0
        %508 = vmatprep.subr.mxu0 0.0
        %509 = vmatpush1.xpose.msra.mxu0 0.0
        %510 = vmatprep.subr.mxu0 0.0
        %511 = vmatpush1.xpose.msra.mxu0 0.0
        %512 = vmatprep.subr.mxu0 0.0
        %513 = vmatpush1.xpose.msra.mxu0 0.0
        %514 = vmatprep.subr.mxu0 0.0
        %515 = vmatpush1.xpose.msra.mxu0 0.0
        %516 = vmatprep.mubr.f32.mxu0 0.0
        %517 = vmatmul.mubr.f32.gmra.mrb[0].mxu0 %v360
        %v518 = vpop.f32.mrb[0].mxu0
        %v519 = vadd.f32 0.0, %v518
        %v520 = vpop.f32.mrb[0].mxu0
        %521 = vdwg.mxu0
        %v522 = vadd.f32 %v450, %v519
        %vm523 = vcmask 64512
        %524 = vst.msk [vmem:[#allocation3] sm:$0xff] %vm523, %v522
        %p525 = scmp.eq.s32.totalorder %s29, 1
        // Predicated region
        $region49: #{tpu_custom_call.1} parent=39 // pred_check
          %p526 = pneg %p525
        $region50: #{tpu_custom_call.1} parent=39 // pred_check_branch
          %528 = sbr.rel (%p526) target = $region52
        $region51: #{tpu_custom_call.1} parent=39 // pred_region
          %v529 = vld [vmem:[#allocation3] sm:$0xff]
          %v530 = vmul.f32 %v529, 0.5
          %v531 = vld [vmem:[%s344] sm:$0xff]
          %v532 = vld [vmem:[%s344 + $0x8] sm:$0xff]
          %v533 = vld [vmem:[%s344 + $0x10] sm:$0xff]
          %v534 = vld [vmem:[%s344 + $0x18] sm:$0xff]
          %v535 = vld [vmem:[%s344 + $0x20] sm:$0xff]
          %v536 = vld [vmem:[%s344 + $0x28] sm:$0xff]
          %v537 = vld [vmem:[%s344 + $0x30] sm:$0xff]
          %v538 = vld [vmem:[%s344 + $0x38] sm:$0xff]
          %v539 = vld [vmem:[%s344 + $0x40] sm:$0xff]
          %v540 = vld [vmem:[%s344 + $0x48] sm:$0xff]
          %v541 = vld [vmem:[%s344 + $0x50] sm:$0xff]
          %v542 = vld [vmem:[%s344 + $0x58] sm:$0xff]
          %v543 = vld [vmem:[%s344 + $0x60] sm:$0xff]
          %v544 = vld [vmem:[%s344 + $0x68] sm:$0xff]
          %v545 = vld [vmem:[%s344 + $0x70] sm:$0xff]
          %v546 = vld [vmem:[%s344 + $0x78] sm:$0xff]
          %v548 = vsel %vm523, %v530, 0
          %v551 = vsel %vm523, %v531, 0
          %v554 = vsel %vm523, %v532, 0
          %v557 = vsel %vm523, %v533, 0
          %v560 = vsel %vm523, %v534, 0
          %v563 = vsel %vm523, %v535, 0
          %v566 = vsel %vm523, %v536, 0
          %v569 = vsel %vm523, %v537, 0
          %v572 = vsel %vm523, %v538, 0
          %v575 = vsel %vm523, %v539, 0
          %v578 = vsel %vm523, %v540, 0
          %v581 = vsel %vm523, %v541, 0
          %v584 = vsel %vm523, %v542, 0
          %v587 = vsel %vm523, %v543, 0
          %v590 = vsel %vm523, %v544, 0
          %v593 = vsel %vm523, %v545, 0
          %v596 = vsel %vm523, %v546, 0
          %598 = vmatprep.subr.mxu0 0.0
          %599 = vmatpush1.xpose.msra.mxu0 %v551
          %600 = vmatprep.subr.mxu0 0.0
          %601 = vmatpush1.xpose.msra.mxu0 %v554
          %602 = vmatprep.subr.mxu0 0.0
          %603 = vmatpush1.xpose.msra.mxu0 %v557
          %604 = vmatprep.subr.mxu0 0.0
          %605 = vmatpush1.xpose.msra.mxu0 %v560
          %606 = vmatprep.subr.mxu0 0.0
          %607 = vmatpush1.xpose.msra.mxu0 %v563
          %608 = vmatprep.subr.mxu0 0.0
          %609 = vmatpush1.xpose.msra.mxu0 %v566
          %610 = vmatprep.subr.mxu0 0.0
          %611 = vmatpush1.xpose.msra.mxu0 %v569
          %612 = vmatprep.subr.mxu0 0.0
          %613 = vmatpush1.xpose.msra.mxu0 %v572
          %614 = vmatprep.subr.mxu0 0.0
          %615 = vmatpush1.xpose.msra.mxu0 %v575
          %616 = vmatprep.subr.mxu0 0.0
          %617 = vmatpush1.xpose.msra.mxu0 %v578
          %618 = vmatprep.subr.mxu0 0.0
          %619 = vmatpush1.xpose.msra.mxu0 %v581
          %620 = vmatprep.subr.mxu0 0.0
          %621 = vmatpush1.xpose.msra.mxu0 %v584
          %622 = vmatprep.subr.mxu0 0.0
          %623 = vmatpush1.xpose.msra.mxu0 %v587
          %624 = vmatprep.subr.mxu0 0.0
          %625 = vmatpush1.xpose.msra.mxu0 %v590
          %626 = vmatprep.subr.mxu0 0.0
          %627 = vmatpush1.xpose.msra.mxu0 %v593
          %628 = vmatprep.subr.mxu0 0.0
          %629 = vmatpush1.xpose.msra.mxu0 %v596
          %630 = vmatprep.subr.mxu0 0.0
          %631 = vmatpush1.xpose.msra.mxu0 0.0
          %632 = vmatprep.subr.mxu0 0.0
          %633 = vmatpush1.xpose.msra.mxu0 0.0
          %634 = vmatprep.subr.mxu0 0.0
          %635 = vmatpush1.xpose.msra.mxu0 0.0
          %636 = vmatprep.subr.mxu0 0.0
          %637 = vmatpush1.xpose.msra.mxu0 0.0
          %638 = vmatprep.subr.mxu0 0.0
          %639 = vmatpush1.xpose.msra.mxu0 0.0
          %640 = vmatprep.subr.mxu0 0.0
          %641 = vmatpush1.xpose.msra.mxu0 0.0
          %642 = vmatprep.subr.mxu0 0.0
          %643 = vmatpush1.xpose.msra.mxu0 0.0
          %644 = vmatprep.subr.mxu0 0.0
          %645 = vmatpush1.xpose.msra.mxu0 0.0
          %646 = vmatprep.subr.mxu0 0.0
          %647 = vmatpush1.xpose.msra.mxu0 0.0
          %648 = vmatprep.subr.mxu0 0.0
          %649 = vmatpush1.xpose.msra.mxu0 0.0
          %650 = vmatprep.subr.mxu0 0.0
          %651 = vmatpush1.xpose.msra.mxu0 0.0
          %652 = vmatprep.subr.mxu0 0.0
          %653 = vmatpush1.xpose.msra.mxu0 0.0
          %654 = vmatprep.subr.mxu0 0.0
          %655 = vmatpush1.xpose.msra.mxu0 0.0
          %656 = vmatprep.subr.mxu0 0.0
          %657 = vmatpush1.xpose.msra.mxu0 0.0
          %658 = vmatprep.subr.mxu0 0.0
          %659 = vmatpush1.xpose.msra.mxu0 0.0
          %660 = vmatprep.subr.mxu0 0.0
          %661 = vmatpush1.xpose.msra.mxu0 0.0
          %662 = vmatprep.mubr.f32.mxu0 0.0
          %663 = vmatmul.mubr.f32.gmra.mrb[0].mxu0 %v548
          %v664 = vpop.f32.mrb[0].mxu0
          %v665 = vadd.f32 0.0, %v664
          %v666 = vpop.f32.mrb[0].mxu0
          %667 = vdwg.mxu0
          %v668 = vld [vmem:[#allocation2] sm:$0xff]
          %v669 = vadd.f32 %v668, %v665
          %v670 = vld [vmem:[%s352] sm:$0x1]
          %v672 = vlaneseq
          %v673 = vshrl.u32 %v672, 7
          %v674 = vsub.s32 0, %v673
          %v675 = vrot.slane %v670, %v674
          %v677 = vadd.f32 %v669, %v675
          %678 = vst [vmem:[%s330] sm:$0xff] %v677
        $region52: #{tpu_custom_call.1} parent=39 // pred_fallthru
          _
        %s679 = sand.u32 %s185, 1
        %s680 = scalar_lea.sflag [#allocation6], %s679
        %s681 = sand.u32 %s185, 1
        %s682 = smul.addr %s681, 8
        %s683 = scalar_lea.vmem [#allocation7], %s682
        // Predicated region
        $region53: #{tpu_custom_call.1} parent=39 // pred_check
          %p684 = pneg %p195
        $region54: #{tpu_custom_call.1} parent=39 // pred_check_branch
          %686 = sbr.rel (%p684) target = $region56
        $region55: #{tpu_custom_call.1} parent=39 // pred_region
          %s688 = ssub.s32 128, 128
          %689 = vsyncadd %s680, %s688
          %s690 = smul.addr %s27, 2
          %s691 = sadd.s32 %s28, %s690
          %s692 = smul.addr %s691, 128
          %s693 = scalar_lea.hbm %s5, %s692
          %s695 = sshll.u32 %s683, 4
          %s696 = int_to_ptr.vmem [resolvable:$true] %s695
          %698 = dma.vmem_to_hbm [thread:$0]  %s696, 128, %s693, %s680
        $region56: #{tpu_custom_call.1} parent=39 // pred_fallthru
          _
      $region40: #{tpu_custom_call.1} parent=5 // pred_fallthru
        _
      %p699 = scmp.le.s32.totalorder 2, %s17
      // Predicated region
      $region57: #{tpu_custom_call.1} parent=5 // pred_check
        %p700 = pneg %p699
      $region58: #{tpu_custom_call.1} parent=5 // pred_check_branch
        %702 = sbr.rel (%p700) target = $region60
      $region59: #{tpu_custom_call.1} parent=5 // pred_region
        %s703 = ssub.s32 %s17, 2
        // Predicated region
        $region61: #{tpu_custom_call.1} parent=59 // pred_check
          %p704 = pneg %p201
        $region62: #{tpu_custom_call.1} parent=59 // pred_check_branch
          %706 = sbr.rel (%p704) target = $region64
        $region63: #{tpu_custom_call.1} parent=59 // pred_region
          %s707 = sand.u32 %s186, 1
          %s708 = scalar_lea.sflag [#allocation6], %s707
          %s709 = sand.u32 %s186, 1
          %s710 = smul.addr %s709, 8
          %s711 = scalar_lea.vmem [#allocation7], %s710
          %712 = dma.done %s708, 128
        $region64: #{tpu_custom_call.1} parent=59 // pred_fallthru
          _
      $region60: #{tpu_custom_call.1} parent=5 // pred_fallthru
        _
    $region6: #{tpu_custom_call.1} parent=1 // loop_footer
      %s21 = sadd.s32 1, %s17
    $region7: #{tpu_custom_call.1} parent=1 // loop_footer_branch
      %16 = sbr.rel target = $region3
    $region8: #{tpu_custom_call.1} parent=1 // loop_exit
      _
    %713 = vsyncpa [#allocation5], 1
    %s714 = scalar_lea.sflag [#allocation5], 1
    %715 = vsyncpa %s714, 1
    %716 = vsyncpa [#allocation6], 1
    %s717 = scalar_lea.sflag [#allocation6], 1
    %718 = vsyncpa %s717, 1

</llo_original>
